<compile_context>
chip_gen: v5e
topology: v5e:2x2
jax: 0.10.0
libtpu: 0.0.40
codegen_flags: <defaults>
</compile_context>

<pallas_src>
import functools

import jax
import jax.numpy as jnp
from jax import lax
from jax.experimental import pallas as pl
from jax.experimental.pallas import tpu as pltpu


def _mm_t(a, b):
    """a @ b^T on the MXU, contracting the last dim of both operands."""
    return lax.dot_general(a, b, (((1,), (1,)), ((), ())),
                           preferred_element_type=jnp.float32)


def _graph_constructor_kernel(e1_blk_ref, e2_blk_ref,    # (BM, D) gathered-embedding row block
                              e1_full_ref, e2_full_ref,  # (Np, D) full gathered embeddings
                              w1_ref, b1_ref,            # (D, D) torch Linear weight (out,in), (1, D)
                              w2_ref, b2_ref,
                              noise_ref,                 # (BM, Np) uniform[0, 0.01) tie-break noise
                              adj_ref,                   # out: (BM, Np)
                              *, k, alpha, n_real):
    # Linear (x @ W^T + b) + tanh for the full node set (needed as the
    # "column" operand of the score matmuls).
    nv1_full = jnp.tanh(alpha * (_mm_t(e1_full_ref[...], w1_ref[...]) + b1_ref[...]))
    nv2_full = jnp.tanh(alpha * (_mm_t(e2_full_ref[...], w2_ref[...]) + b2_ref[...]))

    # Row-block node vectors. If the block covers all rows (single-block
    # grid), reuse the full result instead of recomputing.
    if e1_blk_ref.shape[0] == e1_full_ref.shape[0]:
        nv1_blk, nv2_blk = nv1_full, nv2_full
    else:
        nv1_blk = jnp.tanh(alpha * (_mm_t(e1_blk_ref[...], w1_ref[...]) + b1_ref[...]))
        nv2_blk = jnp.tanh(alpha * (_mm_t(e2_blk_ref[...], w2_ref[...]) + b2_ref[...]))

    # a = nv1 @ nv2^T - nv2 @ nv1^T for this row block: two MXU matmuls,
    # no (N, N) transpose.
    m1 = _mm_t(nv1_blk, nv2_full)
    m2 = _mm_t(nv2_blk, nv1_full)
    adj = jnp.maximum(jnp.tanh(alpha * (m1 - m2)), 0.0)

    # scored = adj + 0.01 * U[0,1); padded columns get a sentinel below any
    # real score so they never enter the top-k of a real row.
    scored = adj + noise_ref[...]
    if n_real < adj.shape[1]:
        col = lax.broadcasted_iota(jnp.int32, adj.shape, 1)
        scored = jnp.where(col < n_real, scored, -1.0)

    # Per-row top-k mask via k successive row-max passes; mask construction
    # is fused into the passes so only one work buffer stays live. Noise
    # breaks ties, so exactly k entries per row survive (same effect as
    # torch.topk + scatter_ of ones).
    work = scored
    mask = jnp.zeros_like(adj)
    for _ in range(k):
        thr = jnp.max(work, axis=1, keepdims=True)
        sel = work >= thr
        mask = jnp.where(sel, 1.0, mask)
        work = jnp.where(sel, -jnp.inf, work)

    adj_ref[...] = adj * mask


def _round_up(x, m):
    return ((x + m - 1) // m) * m


def graph_constructor_forward(idx, emb1, emb2, w1, b1, w2, b2,
                              *, noise, k, alpha, block_rows=128):
    """idx: (N,) int32 node ids.  emb*: (nnodes, dim).  w*: (dim, dim) PyTorch
    Linear weights (out, in).  noise: (N, N) uniform tie-break noise
    (already scaled by 0.01).  Returns (N, N) float32 adjacency."""
    n = idx.shape[0]
    d = emb1.shape[1]

    # Embedding lookup (gather) -> plain JAX glue.
    e1 = emb1[idx].astype(jnp.float32)
    e2 = emb2[idx].astype(jnp.float32)

    # Pad node axis up to a multiple of 128 so the (N, N) output is lane-dense
    # and row blocks tile evenly; padded rows are sliced off afterwards and
    # padded columns are masked out of the top-k inside the kernel.
    bm = block_rows
    n_pad = _round_up(max(n, bm), bm)
    noise_p = noise.astype(jnp.float32)
    if n_pad > n:
        e1 = jnp.pad(e1, ((0, n_pad - n), (0, 0)))
        e2 = jnp.pad(e2, ((0, n_pad - n), (0, 0)))
        noise_p = jnp.pad(noise_p, ((0, n_pad - n), (0, n_pad - n)))

    w1f = w1.astype(jnp.float32)
    w2f = w2.astype(jnp.float32)
    b1r = b1.reshape(1, d).astype(jnp.float32)
    b2r = b2.reshape(1, d).astype(jnp.float32)

    kernel = functools.partial(_graph_constructor_kernel,
                               k=int(k), alpha=float(alpha), n_real=int(n))

    adj_pad = pl.pallas_call(
        kernel,
        out_shape=jax.ShapeDtypeStruct((n_pad, n_pad), jnp.float32),
        grid_spec=pltpu.PrefetchScalarGridSpec(
            num_scalar_prefetch=0,
            grid=(n_pad // bm,),
            in_specs=[
                pl.BlockSpec((bm, d), lambda i: (i, 0)),       # e1 row block
                pl.BlockSpec((bm, d), lambda i: (i, 0)),       # e2 row block
                pl.BlockSpec((n_pad, d), lambda i: (0, 0)),    # e1 full (resident)
                pl.BlockSpec((n_pad, d), lambda i: (0, 0)),    # e2 full (resident)
                pl.BlockSpec((d, d), lambda i: (0, 0)),        # W1
                pl.BlockSpec((1, d), lambda i: (0, 0)),        # b1
                pl.BlockSpec((d, d), lambda i: (0, 0)),        # W2
                pl.BlockSpec((1, d), lambda i: (0, 0)),        # b2
                pl.BlockSpec((bm, n_pad), lambda i: (i, 0)),   # noise row block
            ],
            out_specs=pl.BlockSpec((bm, n_pad), lambda i: (i, 0)),
        ),
        compiler_params=pltpu.CompilerParams(
            dimension_semantics=("parallel",)),
    )(e1, e2, e1, e2, w1f, b1r, w2f, b2r, noise_p)

    if n_pad > n:
        adj_pad = adj_pad[:n, :n]
    return adj_pad


if __name__ == "__main__":
    # Module config (small, consistent with graph_constructor.__init__):
    nnodes = 16     # number of graph nodes
    dim = 32        # embedding / hidden dim
    k = 4           # top-k neighbors per node
    alpha = 3.0

    key = jax.random.PRNGKey(0)
    k1, k2, k3, k4, k5, k6, k7 = jax.random.split(key, 7)

    # Deterministic synthetic parameters (shapes from __init__):
    emb1 = jax.random.normal(k1, (nnodes, dim), jnp.float32)             # nn.Embedding(nnodes, dim)
    emb2 = jax.random.normal(k2, (nnodes, dim), jnp.float32)
    bound = 1.0 / (dim ** 0.5)
    w1 = jax.random.uniform(k3, (dim, dim), jnp.float32, -bound, bound)  # nn.Linear(dim, dim)
    b1 = jax.random.uniform(k4, (dim,), jnp.float32, -bound, bound)
    w2 = jax.random.uniform(k5, (dim, dim), jnp.float32, -bound, bound)
    b2 = jax.random.uniform(k6, (dim,), jnp.float32, -bound, bound)

    idx = jnp.arange(nnodes, dtype=jnp.int32)

    # torch.rand_like(adj) * 0.01 equivalent (generated outside the kernel).
    noise = jax.random.uniform(k7, (nnodes, nnodes), jnp.float32) * 0.01

    adj = graph_constructor_forward(idx, emb1, emb2, w1, b1, w2, b2,
                                    noise=noise, k=k, alpha=alpha)
    adj = jax.block_until_ready(adj)

    # Sanity checks: shape, at most k nonzeros per row.
    assert adj.shape == (nnodes, nnodes)
    nnz_per_row = jnp.sum((adj != 0.0).astype(jnp.int32), axis=1)
    assert int(jnp.max(nnz_per_row)) <= k

    # Numeric check: every surviving entry must match the reference full
    # (unmasked) adjacency at its position.
    nv1 = jnp.tanh(alpha * (emb1[idx] @ w1.T + b1))
    nv2 = jnp.tanh(alpha * (emb2[idx] @ w2.T + b2))
    full_adj = jax.nn.relu(jnp.tanh(alpha * (nv1 @ nv2.T - nv2 @ nv1.T)))
    sel = adj != 0.0
    err = jnp.max(jnp.abs(jnp.where(sel, adj - full_adj, 0.0)))
    assert float(err) < 1e-4, float(err)

    print("KERNEL_OK")
</pallas_src>

<mosaic_0001>
module attributes {stable_mosaic.version = 11 : i64} {
  func.func @_graph_constructor_kernel(%arg0: i32, %arg1: memref<128x32xf32, #tpu.memory_space<vmem>>, %arg2: memref<128x32xf32, #tpu.memory_space<vmem>>, %arg3: memref<128x32xf32, #tpu.memory_space<vmem>>, %arg4: memref<128x32xf32, #tpu.memory_space<vmem>>, %arg5: memref<32x32xf32, #tpu.memory_space<vmem>>, %arg6: memref<1x32xf32, #tpu.memory_space<vmem>>, %arg7: memref<32x32xf32, #tpu.memory_space<vmem>>, %arg8: memref<1x32xf32, #tpu.memory_space<vmem>>, %arg9: memref<128x128xf32, #tpu.memory_space<vmem>>, %arg10: memref<128x128xf32, #tpu.memory_space<vmem>>) attributes {dimension_semantics = [#tpu.dimension_semantics<parallel>], iteration_bounds = array<i64: 1>, scalar_prefetch = 0 : i64, scratch_operands = 0 : i64, tpu.core_type = #tpu.core_type<tc>, window_params = [{transform_indices = @transform_0, window_bounds = array<i64: 128, 32>}, {transform_indices = @transform_1, window_bounds = array<i64: 128, 32>}, {pipeline_mode = #tpu.pipeline_mode<synchronous>, transform_indices = @transform_2, window_bounds = array<i64: 128, 32>}, {pipeline_mode = #tpu.pipeline_mode<synchronous>, transform_indices = @transform_3, window_bounds = array<i64: 128, 32>}, {pipeline_mode = #tpu.pipeline_mode<synchronous>, transform_indices = @transform_4, window_bounds = array<i64: 32, 32>}, {pipeline_mode = #tpu.pipeline_mode<synchronous>, transform_indices = @transform_5, window_bounds = array<i64: 1, 32>}, {pipeline_mode = #tpu.pipeline_mode<synchronous>, transform_indices = @transform_6, window_bounds = array<i64: 32, 32>}, {pipeline_mode = #tpu.pipeline_mode<synchronous>, transform_indices = @transform_7, window_bounds = array<i64: 1, 32>}, {transform_indices = @transform_8, window_bounds = array<i64: 128, 128>}, {transform_indices = @transform_9, window_bounds = array<i64: 128, 128>}]} {
    %c0 = arith.constant 0 : index
    %c0_0 = arith.constant 0 : index
    %0 = vector.load %arg3[%c0, %c0_0] : memref<128x32xf32, #tpu.memory_space<vmem>>, vector<128x32xf32>
    %c0_1 = arith.constant 0 : index
    %c0_2 = arith.constant 0 : index
    %1 = vector.load %arg5[%c0_1, %c0_2] : memref<32x32xf32, #tpu.memory_space<vmem>>, vector<32x32xf32>
    %cst = arith.constant dense<0.000000e+00> : vector<128x32xf32>
    %2 = tpu.matmul %0, %1, %cst {dimension_numbers = #tpu.dot_dimension_numbers<[1], [1], [0], [0], [0, 0, 1, 0], [], []>} : vector<128x32xf32>, vector<32x32xf32>, vector<128x32xf32> -> vector<128x32xf32>
    %c0_3 = arith.constant 0 : index
    %c0_4 = arith.constant 0 : index
    %3 = vector.load %arg6[%c0_3, %c0_4] : memref<1x32xf32, #tpu.memory_space<vmem>>, vector<1x32xf32>
    %4 = vector.broadcast %3 : vector<1x32xf32> to vector<128x32xf32>
    %5 = arith.addf %2, %4 : vector<128x32xf32>
    %cst_5 = arith.constant 3.000000e+00 : f32
    %6 = vector.broadcast %cst_5 : f32 to vector<128x32xf32>
    %7 = arith.mulf %6, %5 : vector<128x32xf32>
    %8 = math.tanh %7 : vector<128x32xf32>
    %c0_6 = arith.constant 0 : index
    %c0_7 = arith.constant 0 : index
    %9 = vector.load %arg4[%c0_6, %c0_7] : memref<128x32xf32, #tpu.memory_space<vmem>>, vector<128x32xf32>
    %c0_8 = arith.constant 0 : index
    %c0_9 = arith.constant 0 : index
    %10 = vector.load %arg7[%c0_8, %c0_9] : memref<32x32xf32, #tpu.memory_space<vmem>>, vector<32x32xf32>
    %cst_10 = arith.constant dense<0.000000e+00> : vector<128x32xf32>
    %11 = tpu.matmul %9, %10, %cst_10 {dimension_numbers = #tpu.dot_dimension_numbers<[1], [1], [0], [0], [0, 0, 1, 0], [], []>} : vector<128x32xf32>, vector<32x32xf32>, vector<128x32xf32> -> vector<128x32xf32>
    %c0_11 = arith.constant 0 : index
    %c0_12 = arith.constant 0 : index
    %12 = vector.load %arg8[%c0_11, %c0_12] : memref<1x32xf32, #tpu.memory_space<vmem>>, vector<1x32xf32>
    %13 = vector.broadcast %12 : vector<1x32xf32> to vector<128x32xf32>
    %14 = arith.addf %11, %13 : vector<128x32xf32>
    %cst_13 = arith.constant 3.000000e+00 : f32
    %15 = vector.broadcast %cst_13 : f32 to vector<128x32xf32>
    %16 = arith.mulf %15, %14 : vector<128x32xf32>
    %17 = math.tanh %16 : vector<128x32xf32>
    %cst_14 = arith.constant dense<0.000000e+00> : vector<128x128xf32>
    %18 = tpu.matmul %8, %17, %cst_14 {dimension_numbers = #tpu.dot_dimension_numbers<[1], [1], [0], [0], [0, 0, 1, 0], [], []>} : vector<128x32xf32>, vector<128x32xf32>, vector<128x128xf32> -> vector<128x128xf32>
    %cst_15 = arith.constant dense<0.000000e+00> : vector<128x128xf32>
    %19 = tpu.matmul %17, %8, %cst_15 {dimension_numbers = #tpu.dot_dimension_numbers<[1], [1], [0], [0], [0, 0, 1, 0], [], []>} : vector<128x32xf32>, vector<128x32xf32>, vector<128x128xf32> -> vector<128x128xf32>
    %20 = arith.subf %18, %19 : vector<128x128xf32>
    %cst_16 = arith.constant 3.000000e+00 : f32
    %21 = vector.broadcast %cst_16 : f32 to vector<128x128xf32>
    %22 = arith.mulf %21, %20 : vector<128x128xf32>
    %23 = math.tanh %22 : vector<128x128xf32>
    %cst_17 = arith.constant 0.000000e+00 : f32
    %24 = vector.broadcast %cst_17 : f32 to vector<128x128xf32>
    %25 = arith.maximumf %23, %24 : vector<128x128xf32>
    %c0_18 = arith.constant 0 : index
    %c0_19 = arith.constant 0 : index
    %26 = vector.load %arg9[%c0_18, %c0_19] : memref<128x128xf32, #tpu.memory_space<vmem>>, vector<128x128xf32>
    %27 = arith.addf %25, %26 : vector<128x128xf32>
    %28 = tpu.iota {dimensions = array<i32: 1>} : vector<128x128xi32>
    %c16_i32 = arith.constant 16 : i32
    %29 = vector.broadcast %c16_i32 : i32 to vector<128x128xi32>
    %30 = arith.cmpi slt, %28, %29 : vector<128x128xi32>
    %cst_20 = arith.constant -1.000000e+00 : f32
    %31 = vector.broadcast %cst_20 : f32 to vector<128x128xf32>
    %32 = arith.select %30, %27, %31 : vector<128x128xi1>, vector<128x128xf32>
    %cst_21 = arith.constant 0.000000e+00 : f32
    %33 = vector.broadcast %cst_21 : f32 to vector<128x128xf32>
    %cst_22 = arith.constant dense<0xFF800000> : vector<128xf32>
    %34 = vector.multi_reduction <maximumf>, %32, %cst_22 [1] : vector<128x128xf32> to vector<128xf32>
    %35 = vector.shape_cast %34 : vector<128xf32> to vector<128x1xf32>
    %36 = vector.broadcast %35 : vector<128x1xf32> to vector<128x128xf32>
    %37 = arith.cmpf oge, %32, %36 : vector<128x128xf32>
    %cst_23 = arith.constant 1.000000e+00 : f32
    %38 = vector.broadcast %cst_23 : f32 to vector<128x128xf32>
    %39 = arith.select %37, %38, %33 : vector<128x128xi1>, vector<128x128xf32>
    %cst_24 = arith.constant 0xFF800000 : f32
    %40 = vector.broadcast %cst_24 : f32 to vector<128x128xf32>
    %41 = arith.select %37, %40, %32 : vector<128x128xi1>, vector<128x128xf32>
    %cst_25 = arith.constant dense<0xFF800000> : vector<128xf32>
    %42 = vector.multi_reduction <maximumf>, %41, %cst_25 [1] : vector<128x128xf32> to vector<128xf32>
    %43 = vector.shape_cast %42 : vector<128xf32> to vector<128x1xf32>
    %44 = vector.broadcast %43 : vector<128x1xf32> to vector<128x128xf32>
    %45 = arith.cmpf oge, %41, %44 : vector<128x128xf32>
    %cst_26 = arith.constant 1.000000e+00 : f32
    %46 = vector.broadcast %cst_26 : f32 to vector<128x128xf32>
    %47 = arith.select %45, %46, %39 : vector<128x128xi1>, vector<128x128xf32>
    %cst_27 = arith.constant 0xFF800000 : f32
    %48 = vector.broadcast %cst_27 : f32 to vector<128x128xf32>
    %49 = arith.select %45, %48, %41 : vector<128x128xi1>, vector<128x128xf32>
    %cst_28 = arith.constant dense<0xFF800000> : vector<128xf32>
    %50 = vector.multi_reduction <maximumf>, %49, %cst_28 [1] : vector<128x128xf32> to vector<128xf32>
    %51 = vector.shape_cast %50 : vector<128xf32> to vector<128x1xf32>
    %52 = vector.broadcast %51 : vector<128x1xf32> to vector<128x128xf32>
    %53 = arith.cmpf oge, %49, %52 : vector<128x128xf32>
    %cst_29 = arith.constant 1.000000e+00 : f32
    %54 = vector.broadcast %cst_29 : f32 to vector<128x128xf32>
    %55 = arith.select %53, %54, %47 : vector<128x128xi1>, vector<128x128xf32>
    %cst_30 = arith.constant 0xFF800000 : f32
    %56 = vector.broadcast %cst_30 : f32 to vector<128x128xf32>
    %57 = arith.select %53, %56, %49 : vector<128x128xi1>, vector<128x128xf32>
    %cst_31 = arith.constant dense<0xFF800000> : vector<128xf32>
    %58 = vector.multi_reduction <maximumf>, %57, %cst_31 [1] : vector<128x128xf32> to vector<128xf32>
    %59 = vector.shape_cast %58 : vector<128xf32> to vector<128x1xf32>
    %60 = vector.broadcast %59 : vector<128x1xf32> to vector<128x128xf32>
    %61 = arith.cmpf oge, %57, %60 : vector<128x128xf32>
    %cst_32 = arith.constant 1.000000e+00 : f32
    %62 = vector.broadcast %cst_32 : f32 to vector<128x128xf32>
    %63 = arith.select %61, %62, %55 : vector<128x128xi1>, vector<128x128xf32>
    %64 = arith.mulf %25, %63 : vector<128x128xf32>
    %c0_33 = arith.constant 0 : index
    %c0_34 = arith.constant 0 : index
    %65 = vector.load %arg10[%c0_33, %c0_34] : memref<128x128xf32, #tpu.memory_space<vmem>>, vector<128x128xf32>
    tpu.vector_store %arg10[%c0_33, %c0_34], %64 {strides = array<i32>} : memref<128x128xf32, #tpu.memory_space<vmem>>, vector<128x128xf32>,
    return
  }
  func.func @transform_0(%arg0: i32) -> (i32, i32) {
    %c0_i32 = arith.constant 0 : i32
    %c0_i32_0 = arith.constant 0 : i32
    return %arg0, %c0_i32 : i32, i32
  }
  func.func @transform_1(%arg0: i32) -> (i32, i32) {
    %c0_i32 = arith.constant 0 : i32
    %c0_i32_0 = arith.constant 0 : i32
    return %arg0, %c0_i32 : i32, i32
  }
  func.func @transform_2(%arg0: i32) -> (i32, i32) {
    %c0_i32 = arith.constant 0 : i32
    %c0_i32_0 = arith.constant 0 : i32
    %c0_i32_1 = arith.constant 0 : i32
    return %c0_i32, %c0_i32_0 : i32, i32
  }
  func.func @transform_3(%arg0: i32) -> (i32, i32) {
    %c0_i32 = arith.constant 0 : i32
    %c0_i32_0 = arith.constant 0 : i32
    %c0_i32_1 = arith.constant 0 : i32
    return %c0_i32, %c0_i32_0 : i32, i32
  }
  func.func @transform_4(%arg0: i32) -> (i32, i32) {
    %c0_i32 = arith.constant 0 : i32
    %c0_i32_0 = arith.constant 0 : i32
    %c0_i32_1 = arith.constant 0 : i32
    return %c0_i32, %c0_i32_0 : i32, i32
  }
  func.func @transform_5(%arg0: i32) -> (i32, i32) {
    %c0_i32 = arith.constant 0 : i32
    %c0_i32_0 = arith.constant 0 : i32
    %c0_i32_1 = arith.constant 0 : i32
    return %c0_i32, %c0_i32_0 : i32, i32
  }
  func.func @transform_6(%arg0: i32) -> (i32, i32) {
    %c0_i32 = arith.constant 0 : i32
    %c0_i32_0 = arith.constant 0 : i32
    %c0_i32_1 = arith.constant 0 : i32
    return %c0_i32, %c0_i32_0 : i32, i32
  }
  func.func @transform_7(%arg0: i32) -> (i32, i32) {
    %c0_i32 = arith.constant 0 : i32
    %c0_i32_0 = arith.constant 0 : i32
    %c0_i32_1 = arith.constant 0 : i32
    return %c0_i32, %c0_i32_0 : i32, i32
  }
  func.func @transform_8(%arg0: i32) -> (i32, i32) {
    %c0_i32 = arith.constant 0 : i32
    %c0_i32_0 = arith.constant 0 : i32
    return %arg0, %c0_i32 : i32, i32
  }
  func.func @transform_9(%arg0: i32) -> (i32, i32) {
    %c0_i32 = arith.constant 0 : i32
    %c0_i32_0 = arith.constant 0 : i32
    return %arg0, %c0_i32 : i32, i32
  }
}

</mosaic_0001>

<llo_original>
// kernel: tpu_custom_call.1
$region0: #{tpu_custom_call.1}
  #allocation0 [shape = 'u32[]', space=smem, size = 0x4, offset = 0x4, fixed_abs, tag = 'smem constant byte address 0x4 - core index']
  #allocation1 [shape = 'u32[72,128]{1,0:T(1,128)}', space=vmem, size = 0x9000, scoped, tag = 'internal scratch']
  %s0 = inlined_call_operand.vmem [shape: f32[128,32], index: 0, kind: input, shape index: {}]
  %s1 = inlined_call_operand.vmem [shape: f32[128,32], index: 1, kind: input, shape index: {}]
  %s2 = inlined_call_operand.vmem [shape: f32[128,32], index: 2, kind: input, shape index: {}]
  %s3 = inlined_call_operand.vmem [shape: f32[128,32], index: 3, kind: input, shape index: {}]
  %s4 = inlined_call_operand.vmem [shape: f32[32,32], index: 4, kind: input, shape index: {}]
  %s5 = inlined_call_operand.vmem [shape: f32[1,32], index: 5, kind: input, shape index: {}]
  %s6 = inlined_call_operand.vmem [shape: f32[32,32], index: 6, kind: input, shape index: {}]
  %s7 = inlined_call_operand.vmem [shape: f32[1,32], index: 7, kind: input, shape index: {}]
  %s8 = inlined_call_operand.vmem [shape: f32[128,128], index: 8, kind: input, shape index: {}]
  %s9 = inlined_call_operand.hbm [shape: f32[128,128], index: 9, kind: output, shape index: {}]
  %s10 = sld [smem:[#allocation0]]
  $region46: #{tpu_custom_call.1} parent=0
    _
  %s12 = ssub.s32 1, %s10
  %s13 = scalar_select 0, %s12, %s10
  $region1: #{tpu_custom_call.1} parent=0
    #allocation2 [shape = 'u8[65536]{0}', space=vmem, size = 0x10000, scoped, tag = 'output window, operand 0, single buffered']
    #allocation3 [shape = 's32[1]{0}', space=sflag, size = 0x4, scoped, tag = 'scoped memory for tpu_custom_call.1']
    %14 = vsyncpa [#allocation3], 0
    // Predicated region
    $region2: #{tpu_custom_call.1} parent=1 // pred_check
      _
    $region3: #{tpu_custom_call.1} parent=1 // pred_check_branch
      %16 = sbr.rel (0) target = $region5
    $region4: #{tpu_custom_call.1} parent=1 // pred_region
      _
    $region5: #{tpu_custom_call.1} parent=1 // pred_fallthru
      _
    // Predicated region
    $region6: #{tpu_custom_call.1} parent=1 // pred_check
      _
    $region7: #{tpu_custom_call.1} parent=1 // pred_check_branch
      %18 = sbr.rel (0) target = $region9
    $region8: #{tpu_custom_call.1} parent=1 // pred_region
      _
    $region9: #{tpu_custom_call.1} parent=1 // pred_fallthru
      _
    // Predicated region
    $region10: #{tpu_custom_call.1} parent=1 // pred_check
      _
    $region11: #{tpu_custom_call.1} parent=1 // pred_check_branch
      %20 = sbr.rel (0) target = $region13
    $region12: #{tpu_custom_call.1} parent=1 // pred_region
      _
    $region13: #{tpu_custom_call.1} parent=1 // pred_fallthru
      _
    // Predicated region
    $region14: #{tpu_custom_call.1} parent=1 // pred_check
      _
    $region15: #{tpu_custom_call.1} parent=1 // pred_check_branch
      %22 = sbr.rel (0) target = $region17
    $region16: #{tpu_custom_call.1} parent=1 // pred_region
      _
    $region17: #{tpu_custom_call.1} parent=1 // pred_fallthru
      _
    // Predicated region
    $region18: #{tpu_custom_call.1} parent=1 // pred_check
      _
    $region19: #{tpu_custom_call.1} parent=1 // pred_check_branch
      %24 = sbr.rel (0) target = $region21
    $region20: #{tpu_custom_call.1} parent=1 // pred_region
      _
    $region21: #{tpu_custom_call.1} parent=1 // pred_fallthru
      _
    // Predicated region
    $region22: #{tpu_custom_call.1} parent=1 // pred_check
      _
    $region23: #{tpu_custom_call.1} parent=1 // pred_check_branch
      %26 = sbr.rel (0) target = $region25
    $region24: #{tpu_custom_call.1} parent=1 // pred_region
      _
    $region25: #{tpu_custom_call.1} parent=1 // pred_fallthru
      _
    // Predicated region
    $region26: #{tpu_custom_call.1} parent=1 // pred_check
      _
    $region27: #{tpu_custom_call.1} parent=1 // pred_check_branch
      %28 = sbr.rel (0) target = $region29
    $region28: #{tpu_custom_call.1} parent=1 // pred_region
      _
    $region29: #{tpu_custom_call.1} parent=1 // pred_fallthru
      _
    // Predicated region
    $region30: #{tpu_custom_call.1} parent=1 // pred_check
      _
    $region31: #{tpu_custom_call.1} parent=1 // pred_check_branch
      %30 = sbr.rel (0) target = $region33
    $region32: #{tpu_custom_call.1} parent=1 // pred_region
      _
    $region33: #{tpu_custom_call.1} parent=1 // pred_fallthru
      _
    // Predicated region
    $region34: #{tpu_custom_call.1} parent=1 // pred_check
      _
    $region35: #{tpu_custom_call.1} parent=1 // pred_check_branch
      %32 = sbr.rel (0) target = $region37
    $region36: #{tpu_custom_call.1} parent=1 // pred_region
      _
    $region37: #{tpu_custom_call.1} parent=1 // pred_fallthru
      _
    %v33 = vld [vmem:[%s2] sm:$0xff]
    %v34 = vld [vmem:[%s2 + $0x8] sm:$0xff]
    %v35 = vld [vmem:[%s2 + $0x10] sm:$0xff]
    %v36 = vld [vmem:[%s2 + $0x18] sm:$0xff]
    %v37 = vld [vmem:[%s2 + $0x20] sm:$0xff]
    %v38 = vld [vmem:[%s2 + $0x28] sm:$0xff]
    %v39 = vld [vmem:[%s2 + $0x30] sm:$0xff]
    %v40 = vld [vmem:[%s2 + $0x38] sm:$0xff]
    %v41 = vld [vmem:[%s2 + $0x40] sm:$0xff]
    %v42 = vld [vmem:[%s2 + $0x48] sm:$0xff]
    %v43 = vld [vmem:[%s2 + $0x50] sm:$0xff]
    %v44 = vld [vmem:[%s2 + $0x58] sm:$0xff]
    %v45 = vld [vmem:[%s2 + $0x60] sm:$0xff]
    %v46 = vld [vmem:[%s2 + $0x68] sm:$0xff]
    %v47 = vld [vmem:[%s2 + $0x70] sm:$0xff]
    %v48 = vld [vmem:[%s2 + $0x78] sm:$0xff]
    %v49 = vld [vmem:[%s4] sm:$0xff]
    %v50 = vld [vmem:[%s4 + $0x8] sm:$0xff]
    %v51 = vld [vmem:[%s4 + $0x10] sm:$0xff]
    %v52 = vld [vmem:[%s4 + $0x18] sm:$0xff]
    %v53 = vld [vmem:[%s5] sm:$0x1]
    %v55 = vperm.slane %v53, 0
    %vm57 = vcmask 261120
    %v59 = vsel %vm57, %v33, 0
    %v62 = vsel %vm57, %v34, 0
    %v65 = vsel %vm57, %v35, 0
    %v68 = vsel %vm57, %v36, 0
    %v71 = vsel %vm57, %v37, 0
    %v74 = vsel %vm57, %v38, 0
    %v77 = vsel %vm57, %v39, 0
    %v80 = vsel %vm57, %v40, 0
    %v83 = vsel %vm57, %v41, 0
    %v86 = vsel %vm57, %v42, 0
    %v89 = vsel %vm57, %v43, 0
    %v92 = vsel %vm57, %v44, 0
    %v95 = vsel %vm57, %v45, 0
    %v98 = vsel %vm57, %v46, 0
    %v101 = vsel %vm57, %v47, 0
    %v104 = vsel %vm57, %v48, 0
    %v107 = vsel %vm57, %v49, 0
    %v110 = vsel %vm57, %v50, 0
    %v113 = vsel %vm57, %v51, 0
    %v116 = vsel %vm57, %v52, 0
    %118 = vmatpush.xpose.msra.mxu0 0.0
    %119 = vmatpush.xpose.msra.mxu0 0.0
    %120 = vmatpush.xpose.msra.mxu0 0.0
    %121 = vmatpush.xpose.msra.mxu0 0.0
    %122 = vmatpush.xpose.msra.mxu0 0.0
    %123 = vmatpush.xpose.msra.mxu0 0.0
    %124 = vmatpush.xpose.msra.mxu0 0.0
    %125 = vmatpush.xpose.msra.mxu0 0.0
    %126 = vmatpush.xpose.msra.mxu0 0.0
    %127 = vmatpush.xpose.msra.mxu0 0.0
    %128 = vmatpush.xpose.msra.mxu0 0.0
    %129 = vmatpush.xpose.msra.mxu0 0.0
    %130 = vmatpush.xpose.msra.mxu0 %v116
    %131 = vmatpush.xpose.msra.mxu0 %v113
    %132 = vmatpush.xpose.msra.mxu0 %v110
    %133 = vmatpush.xpose.msra.mxu0 %v107
    %134 = vmatmul.f32.gmra.mxu0 %v59
    %v135 = vpop.f32.mrf.mxu0
    %v136 = vadd.f32 %v55, %v135
    %137 = vmatmul.f32.gmra.mxu0 %v62
    %v138 = vpop.f32.mrf.mxu0
    %v139 = vadd.f32 %v55, %v138
    %140 = vmatmul.f32.gmra.mxu0 %v65
    %v141 = vpop.f32.mrf.mxu0
    %v142 = vadd.f32 %v55, %v141
    %143 = vmatmul.f32.gmra.mxu0 %v68
    %v144 = vpop.f32.mrf.mxu0
    %v145 = vadd.f32 %v55, %v144
    %146 = vmatmul.f32.gmra.mxu0 %v71
    %v147 = vpop.f32.mrf.mxu0
    %v148 = vadd.f32 %v55, %v147
    %149 = vmatmul.f32.gmra.mxu0 %v74
    %v150 = vpop.f32.mrf.mxu0
    %v151 = vadd.f32 %v55, %v150
    %152 = vmatmul.f32.gmra.mxu0 %v77
    %v153 = vpop.f32.mrf.mxu0
    %v154 = vadd.f32 %v55, %v153
    %155 = vmatmul.f32.gmra.mxu0 %v80
    %v156 = vpop.f32.mrf.mxu0
    %v157 = vadd.f32 %v55, %v156
    %158 = vmatmul.f32.gmra.mxu0 %v83
    %v159 = vpop.f32.mrf.mxu0
    %v160 = vadd.f32 %v55, %v159
    %161 = vmatmul.f32.gmra.mxu0 %v86
    %v162 = vpop.f32.mrf.mxu0
    %v163 = vadd.f32 %v55, %v162
    %164 = vmatmul.f32.gmra.mxu0 %v89
    %v165 = vpop.f32.mrf.mxu0
    %v166 = vadd.f32 %v55, %v165
    %167 = vmatmul.f32.gmra.mxu0 %v92
    %v168 = vpop.f32.mrf.mxu0
    %v169 = vadd.f32 %v55, %v168
    %170 = vmatmul.f32.gmra.mxu0 %v95
    %v171 = vpop.f32.mrf.mxu0
    %v172 = vadd.f32 %v55, %v171
    %173 = vmatmul.f32.gmra.mxu0 %v98
    %v174 = vpop.f32.mrf.mxu0
    %v175 = vadd.f32 %v55, %v174
    %176 = vmatmul.f32.gmra.mxu0 %v101
    %v177 = vpop.f32.mrf.mxu0
    %v178 = vadd.f32 %v55, %v177
    %179 = vmatmul.f32.gmra.mxu0 %v104
    %v180 = vpop.f32.mrf.mxu0
    %v181 = vadd.f32 %v55, %v180
    %182 = vdwg.mxu0
    %v183 = vmul.f32 %v136, 3.0
    %v184 = vmul.f32 %v139, 3.0
    %v185 = vmul.f32 %v142, 3.0
    %v186 = vmul.f32 %v145, 3.0
    %v187 = vmul.f32 %v148, 3.0
    %v188 = vmul.f32 %v151, 3.0
    %v189 = vmul.f32 %v154, 3.0
    %v190 = vmul.f32 %v157, 3.0
    %v191 = vmul.f32 %v160, 3.0
    %v192 = vmul.f32 %v163, 3.0
    %v193 = vmul.f32 %v166, 3.0
    %v194 = vmul.f32 %v169, 3.0
    %v195 = vmul.f32 %v172, 3.0
    %v196 = vmul.f32 %v175, 3.0
    %v197 = vmul.f32 %v178, 3.0
    %v198 = vmul.f32 %v181, 3.0
    %v199 = vtanh.pop %v183
    %v200 = vtanh.pop %v184
    %v201 = vtanh.pop %v185
    %v202 = vtanh.pop %v186
    %v203 = vtanh.pop %v187
    %v204 = vtanh.pop %v188
    %v205 = vtanh.pop %v189
    %v206 = vtanh.pop %v190
    %v207 = vtanh.pop %v191
    %v208 = vtanh.pop %v192
    %v209 = vtanh.pop %v193
    %v210 = vtanh.pop %v194
    %v211 = vtanh.pop %v195
    %v212 = vtanh.pop %v196
    %v213 = vtanh.pop %v197
    %v214 = vtanh.pop %v198
    %v215 = vld [vmem:[%s3] sm:$0xff]
    %v216 = vld [vmem:[%s3 + $0x8] sm:$0xff]
    %v217 = vld [vmem:[%s3 + $0x10] sm:$0xff]
    %v218 = vld [vmem:[%s3 + $0x18] sm:$0xff]
    %v219 = vld [vmem:[%s3 + $0x20] sm:$0xff]
    %v220 = vld [vmem:[%s3 + $0x28] sm:$0xff]
    %v221 = vld [vmem:[%s3 + $0x30] sm:$0xff]
    %v222 = vld [vmem:[%s3 + $0x38] sm:$0xff]
    %v223 = vld [vmem:[%s3 + $0x40] sm:$0xff]
    %v224 = vld [vmem:[%s3 + $0x48] sm:$0xff]
    %v225 = vld [vmem:[%s3 + $0x50] sm:$0xff]
    %v226 = vld [vmem:[%s3 + $0x58] sm:$0xff]
    %v227 = vld [vmem:[%s3 + $0x60] sm:$0xff]
    %v228 = vld [vmem:[%s3 + $0x68] sm:$0xff]
    %v229 = vld [vmem:[%s3 + $0x70] sm:$0xff]
    %v230 = vld [vmem:[%s3 + $0x78] sm:$0xff]
    %v231 = vld [vmem:[%s6] sm:$0xff]
    %v232 = vld [vmem:[%s6 + $0x8] sm:$0xff]
    %v233 = vld [vmem:[%s6 + $0x10] sm:$0xff]
    %v234 = vld [vmem:[%s6 + $0x18] sm:$0xff]
    %v235 = vld [vmem:[%s7] sm:$0x1]
    %v237 = vperm.slane %v235, 0
    %v240 = vsel %vm57, %v215, 0
    %v243 = vsel %vm57, %v216, 0
    %v246 = vsel %vm57, %v217, 0
    %v249 = vsel %vm57, %v218, 0
    %v252 = vsel %vm57, %v219, 0
    %v255 = vsel %vm57, %v220, 0
    %v258 = vsel %vm57, %v221, 0
    %v261 = vsel %vm57, %v222, 0
    %v264 = vsel %vm57, %v223, 0
    %v267 = vsel %vm57, %v224, 0
    %v270 = vsel %vm57, %v225, 0
    %v273 = vsel %vm57, %v226, 0
    %v276 = vsel %vm57, %v227, 0
    %v279 = vsel %vm57, %v228, 0
    %v282 = vsel %vm57, %v229, 0
    %v285 = vsel %vm57, %v230, 0
    %v288 = vsel %vm57, %v231, 0
    %v291 = vsel %vm57, %v232, 0
    %v294 = vsel %vm57, %v233, 0
    %v297 = vsel %vm57, %v234, 0
    %299 = vmatpush.xpose.msra.mxu0 0.0
    %300 = vmatpush.xpose.msra.mxu0 0.0
    %301 = vmatpush.xpose.msra.mxu0 0.0
    %302 = vmatpush.xpose.msra.mxu0 0.0
    %303 = vmatpush.xpose.msra.mxu0 0.0
    %304 = vmatpush.xpose.msra.mxu0 0.0
    %305 = vmatpush.xpose.msra.mxu0 0.0
    %306 = vmatpush.xpose.msra.mxu0 0.0
    %307 = vmatpush.xpose.msra.mxu0 0.0
    %308 = vmatpush.xpose.msra.mxu0 0.0
    %309 = vmatpush.xpose.msra.mxu0 0.0
    %310 = vmatpush.xpose.msra.mxu0 0.0
    %311 = vmatpush.xpose.msra.mxu0 %v297
    %312 = vmatpush.xpose.msra.mxu0 %v294
    %313 = vmatpush.xpose.msra.mxu0 %v291
    %314 = vmatpush.xpose.msra.mxu0 %v288
    %315 = vmatmul.f32.gmra.mxu0 %v240
    %v316 = vpop.f32.mrf.mxu0
    %v317 = vadd.f32 %v237, %v316
    %318 = vmatmul.f32.gmra.mxu0 %v243
    %v319 = vpop.f32.mrf.mxu0
    %v320 = vadd.f32 %v237, %v319
    %321 = vmatmul.f32.gmra.mxu0 %v246
    %v322 = vpop.f32.mrf.mxu0
    %v323 = vadd.f32 %v237, %v322
    %324 = vmatmul.f32.gmra.mxu0 %v249
    %v325 = vpop.f32.mrf.mxu0
    %v326 = vadd.f32 %v237, %v325
    %327 = vmatmul.f32.gmra.mxu0 %v252
    %v328 = vpop.f32.mrf.mxu0
    %v329 = vadd.f32 %v237, %v328
    %330 = vmatmul.f32.gmra.mxu0 %v255
    %v331 = vpop.f32.mrf.mxu0
    %v332 = vadd.f32 %v237, %v331
    %333 = vmatmul.f32.gmra.mxu0 %v258
    %v334 = vpop.f32.mrf.mxu0
    %v335 = vadd.f32 %v237, %v334
    %336 = vmatmul.f32.gmra.mxu0 %v261
    %v337 = vpop.f32.mrf.mxu0
    %v338 = vadd.f32 %v237, %v337
    %339 = vmatmul.f32.gmra.mxu0 %v264
    %v340 = vpop.f32.mrf.mxu0
    %v341 = vadd.f32 %v237, %v340
    %342 = vmatmul.f32.gmra.mxu0 %v267
    %v343 = vpop.f32.mrf.mxu0
    %v344 = vadd.f32 %v237, %v343
    %345 = vmatmul.f32.gmra.mxu0 %v270
    %v346 = vpop.f32.mrf.mxu0
    %v347 = vadd.f32 %v237, %v346
    %348 = vmatmul.f32.gmra.mxu0 %v273
    %v349 = vpop.f32.mrf.mxu0
    %v350 = vadd.f32 %v237, %v349
    %351 = vmatmul.f32.gmra.mxu0 %v276
    %v352 = vpop.f32.mrf.mxu0
    %v353 = vadd.f32 %v237, %v352
    %354 = vmatmul.f32.gmra.mxu0 %v279
    %v355 = vpop.f32.mrf.mxu0
    %v356 = vadd.f32 %v237, %v355
    %357 = vmatmul.f32.gmra.mxu0 %v282
    %v358 = vpop.f32.mrf.mxu0
    %v359 = vadd.f32 %v237, %v358
    %360 = vmatmul.f32.gmra.mxu0 %v285
    %v361 = vpop.f32.mrf.mxu0
    %v362 = vadd.f32 %v237, %v361
    %363 = vdwg.mxu0
    %v364 = vmul.f32 %v317, 3.0
    %v365 = vmul.f32 %v320, 3.0
    %v366 = vmul.f32 %v323, 3.0
    %v367 = vmul.f32 %v326, 3.0
    %v368 = vmul.f32 %v329, 3.0
    %v369 = vmul.f32 %v332, 3.0
    %v370 = vmul.f32 %v335, 3.0
    %v371 = vmul.f32 %v338, 3.0
    %v372 = vmul.f32 %v341, 3.0
    %v373 = vmul.f32 %v344, 3.0
    %v374 = vmul.f32 %v347, 3.0
    %v375 = vmul.f32 %v350, 3.0
    %v376 = vmul.f32 %v353, 3.0
    %v377 = vmul.f32 %v356, 3.0
    %v378 = vmul.f32 %v359, 3.0
    %v379 = vmul.f32 %v362, 3.0
    %v380 = vtanh.pop %v364
    %v381 = vtanh.pop %v365
    %v382 = vtanh.pop %v366
    %v383 = vtanh.pop %v367
    %v384 = vtanh.pop %v368
    %v385 = vtanh.pop %v369
    %v386 = vtanh.pop %v370
    %v387 = vtanh.pop %v371
    %v388 = vtanh.pop %v372
    %v389 = vtanh.pop %v373
    %v390 = vtanh.pop %v374
    %v391 = vtanh.pop %v375
    %v392 = vtanh.pop %v376
    %v393 = vtanh.pop %v377
    %v394 = vtanh.pop %v378
    %v395 = vtanh.pop %v379
    %v397 = vsel %vm57, %v199, 0
    %v400 = vsel %vm57, %v200, 0
    %v403 = vsel %vm57, %v201, 0
    %v406 = vsel %vm57, %v202, 0
    %v409 = vsel %vm57, %v203, 0
    %v412 = vsel %vm57, %v204, 0
    %v415 = vsel %vm57, %v205, 0
    %v418 = vsel %vm57, %v206, 0
    %v421 = vsel %vm57, %v207, 0
    %v424 = vsel %vm57, %v208, 0
    %v427 = vsel %vm57, %v209, 0
    %v430 = vsel %vm57, %v210, 0
    %v433 = vsel %vm57, %v211, 0
    %v436 = vsel %vm57, %v212, 0
    %v439 = vsel %vm57, %v213, 0
    %v442 = vsel %vm57, %v214, 0
    %v445 = vsel %vm57, %v380, 0
    %v448 = vsel %vm57, %v381, 0
    %v451 = vsel %vm57, %v382, 0
    %v454 = vsel %vm57, %v383, 0
    %v457 = vsel %vm57, %v384, 0
    %v460 = vsel %vm57, %v385, 0
    %v463 = vsel %vm57, %v386, 0
    %v466 = vsel %vm57, %v387, 0
    %v469 = vsel %vm57, %v388, 0
    %v472 = vsel %vm57, %v389, 0
    %v475 = vsel %vm57, %v390, 0
    %v478 = vsel %vm57, %v391, 0
    %v481 = vsel %vm57, %v392, 0
    %v484 = vsel %vm57, %v393, 0
    %v487 = vsel %vm57, %v394, 0
    %v490 = vsel %vm57, %v395, 0
    %492 = vmatpush.xpose.msra.mxu0 %v490
    %493 = vmatpush.xpose.msra.mxu0 %v487
    %494 = vmatpush.xpose.msra.mxu0 %v484
    %495 = vmatpush.xpose.msra.mxu0 %v481
    %496 = vmatpush.xpose.msra.mxu0 %v478
    %497 = vmatpush.xpose.msra.mxu0 %v475
    %498 = vmatpush.xpose.msra.mxu0 %v472
    %499 = vmatpush.xpose.msra.mxu0 %v469
    %500 = vmatpush.xpose.msra.mxu0 %v466
    %501 = vmatpush.xpose.msra.mxu0 %v463
    %502 = vmatpush.xpose.msra.mxu0 %v460
    %503 = vmatpush.xpose.msra.mxu0 %v457
    %504 = vmatpush.xpose.msra.mxu0 %v454
    %505 = vmatpush.xpose.msra.mxu0 %v451
    %506 = vmatpush.xpose.msra.mxu0 %v448
    %507 = vmatpush.xpose.msra.mxu0 %v445
    %508 = vmatmul.f32.gmra.mxu0 %v397
    %v509 = vpop.f32.mrf.mxu0
    %v510 = vadd.f32 0.0, %v509
    %511 = vmatmul.f32.gmra.mxu0 %v400
    %v512 = vpop.f32.mrf.mxu0
    %v513 = vadd.f32 0.0, %v512
    %514 = vmatmul.f32.gmra.mxu0 %v403
    %v515 = vpop.f32.mrf.mxu0
    %v516 = vadd.f32 0.0, %v515
    %517 = vmatmul.f32.gmra.mxu0 %v406
    %v518 = vpop.f32.mrf.mxu0
    %v519 = vadd.f32 0.0, %v518
    %520 = vmatmul.f32.gmra.mxu0 %v409
    %v521 = vpop.f32.mrf.mxu0
    %v522 = vadd.f32 0.0, %v521
    %523 = vmatmul.f32.gmra.mxu0 %v412
    %v524 = vpop.f32.mrf.mxu0
    %v525 = vadd.f32 0.0, %v524
    %526 = vmatmul.f32.gmra.mxu0 %v415
    %v527 = vpop.f32.mrf.mxu0
    %v528 = vadd.f32 0.0, %v527
    %529 = vmatmul.f32.gmra.mxu0 %v418
    %v530 = vpop.f32.mrf.mxu0
    %v531 = vadd.f32 0.0, %v530
    %532 = vmatmul.f32.gmra.mxu0 %v421
    %v533 = vpop.f32.mrf.mxu0
    %v534 = vadd.f32 0.0, %v533
    %535 = vmatmul.f32.gmra.mxu0 %v424
    %v536 = vpop.f32.mrf.mxu0
    %v537 = vadd.f32 0.0, %v536
    %538 = vmatmul.f32.gmra.mxu0 %v427
    %v539 = vpop.f32.mrf.mxu0
    %v540 = vadd.f32 0.0, %v539
    %541 = vmatmul.f32.gmra.mxu0 %v430
    %v542 = vpop.f32.mrf.mxu0
    %v543 = vadd.f32 0.0, %v542
    %544 = vmatmul.f32.gmra.mxu0 %v433
    %v545 = vpop.f32.mrf.mxu0
    %v546 = vadd.f32 0.0, %v545
    %547 = vmatmul.f32.gmra.mxu0 %v436
    %v548 = vpop.f32.mrf.mxu0
    %v549 = vadd.f32 0.0, %v548
    %550 = vmatmul.f32.gmra.mxu0 %v439
    %v551 = vpop.f32.mrf.mxu0
    %v552 = vadd.f32 0.0, %v551
    %553 = vmatmul.f32.gmra.mxu0 %v442
    %v554 = vpop.f32.mrf.mxu0
    %v555 = vadd.f32 0.0, %v554
    %556 = vdwg.mxu0
    %557 = vmatpush.xpose.msra.mxu0 %v442
    %558 = vmatpush.xpose.msra.mxu0 %v439
    %559 = vmatpush.xpose.msra.mxu0 %v436
    %560 = vmatpush.xpose.msra.mxu0 %v433
    %561 = vmatpush.xpose.msra.mxu0 %v430
    %562 = vmatpush.xpose.msra.mxu0 %v427
    %563 = vmatpush.xpose.msra.mxu0 %v424
    %564 = vmatpush.xpose.msra.mxu0 %v421
    %565 = vmatpush.xpose.msra.mxu0 %v418
    %566 = vmatpush.xpose.msra.mxu0 %v415
    %567 = vmatpush.xpose.msra.mxu0 %v412
    %568 = vmatpush.xpose.msra.mxu0 %v409
    %569 = vmatpush.xpose.msra.mxu0 %v406
    %570 = vmatpush.xpose.msra.mxu0 %v403
    %571 = vmatpush.xpose.msra.mxu0 %v400
    %572 = vmatpush.xpose.msra.mxu0 %v397
    %573 = vmatmul.f32.gmra.mxu0 %v445
    %v574 = vpop.f32.mrf.mxu0
    %v575 = vadd.f32 0.0, %v574
    %576 = vmatmul.f32.gmra.mxu0 %v448
    %v577 = vpop.f32.mrf.mxu0
    %v578 = vadd.f32 0.0, %v577
    %579 = vmatmul.f32.gmra.mxu0 %v451
    %v580 = vpop.f32.mrf.mxu0
    %v581 = vadd.f32 0.0, %v580
    %582 = vmatmul.f32.gmra.mxu0 %v454
    %v583 = vpop.f32.mrf.mxu0
    %v584 = vadd.f32 0.0, %v583
    %585 = vmatmul.f32.gmra.mxu0 %v457
    %v586 = vpop.f32.mrf.mxu0
    %v587 = vadd.f32 0.0, %v586
    %588 = vmatmul.f32.gmra.mxu0 %v460
    %v589 = vpop.f32.mrf.mxu0
    %v590 = vadd.f32 0.0, %v589
    %591 = vmatmul.f32.gmra.mxu0 %v463
    %v592 = vpop.f32.mrf.mxu0
    %v593 = vadd.f32 0.0, %v592
    %594 = vmatmul.f32.gmra.mxu0 %v466
    %v595 = vpop.f32.mrf.mxu0
    %v596 = vadd.f32 0.0, %v595
    %597 = vmatmul.f32.gmra.mxu0 %v469
    %v598 = vpop.f32.mrf.mxu0
    %v599 = vadd.f32 0.0, %v598
    %600 = vmatmul.f32.gmra.mxu0 %v472
    %v601 = vpop.f32.mrf.mxu0
    %v602 = vadd.f32 0.0, %v601
    %603 = vmatmul.f32.gmra.mxu0 %v475
    %v604 = vpop.f32.mrf.mxu0
    %v605 = vadd.f32 0.0, %v604
    %606 = vmatmul.f32.gmra.mxu0 %v478
    %v607 = vpop.f32.mrf.mxu0
    %v608 = vadd.f32 0.0, %v607
    %609 = vmatmul.f32.gmra.mxu0 %v481
    %v610 = vpop.f32.mrf.mxu0
    %v611 = vadd.f32 0.0, %v610
    %612 = vmatmul.f32.gmra.mxu0 %v484
    %v613 = vpop.f32.mrf.mxu0
    %v614 = vadd.f32 0.0, %v613
    %615 = vmatmul.f32.gmra.mxu0 %v487
    %v616 = vpop.f32.mrf.mxu0
    %v617 = vadd.f32 0.0, %v616
    %618 = vmatmul.f32.gmra.mxu0 %v490
    %v619 = vpop.f32.mrf.mxu0
    %v620 = vadd.f32 0.0, %v619
    %621 = vdwg.mxu0
    %v622 = vsub.f32 %v510, %v575
    %v623 = vsub.f32 %v513, %v578
    %v624 = vsub.f32 %v516, %v581
    %v625 = vsub.f32 %v519, %v584
    %v626 = vsub.f32 %v522, %v587
    %v627 = vsub.f32 %v525, %v590
    %v628 = vsub.f32 %v528, %v593
    %v629 = vsub.f32 %v531, %v596
    %v630 = vsub.f32 %v534, %v599
    %v631 = vsub.f32 %v537, %v602
    %v632 = vsub.f32 %v540, %v605
    %v633 = vsub.f32 %v543, %v608
    %v634 = vsub.f32 %v546, %v611
    %v635 = vsub.f32 %v549, %v614
    %v636 = vsub.f32 %v552, %v617
    %v637 = vsub.f32 %v555, %v620
    %v638 = vmul.f32 %v622, 3.0
    %v639 = vmul.f32 %v623, 3.0
    %v640 = vmul.f32 %v624, 3.0
    %v641 = vmul.f32 %v625, 3.0
    %v642 = vmul.f32 %v626, 3.0
    %v643 = vmul.f32 %v627, 3.0
    %v644 = vmul.f32 %v628, 3.0
    %v645 = vmul.f32 %v629, 3.0
    %v646 = vmul.f32 %v630, 3.0
    %v647 = vmul.f32 %v631, 3.0
    %v648 = vmul.f32 %v632, 3.0
    %v649 = vmul.f32 %v633, 3.0
    %v650 = vmul.f32 %v634, 3.0
    %v651 = vmul.f32 %v635, 3.0
    %v652 = vmul.f32 %v636, 3.0
    %v653 = vmul.f32 %v637, 3.0
    %v654 = vtanh.pop %v638
    %v655 = vtanh.pop %v639
    %v656 = vtanh.pop %v640
    %v657 = vtanh.pop %v641
    %v658 = vtanh.pop %v642
    %v659 = vtanh.pop %v643
    %v660 = vtanh.pop %v644
    %v661 = vtanh.pop %v645
    %v662 = vtanh.pop %v646
    %v663 = vtanh.pop %v647
    %v664 = vtanh.pop %v648
    %v665 = vtanh.pop %v649
    %v666 = vtanh.pop %v650
    %v667 = vtanh.pop %v651
    %v668 = vtanh.pop %v652
    %v669 = vtanh.pop %v653
    %v670 = vmax.f32 %v654, 0.0
    %v671 = vmax.f32 %v655, 0.0
    %v672 = vmax.f32 %v656, 0.0
    %v673 = vmax.f32 %v657, 0.0
    %v674 = vmax.f32 %v658, 0.0
    %v675 = vmax.f32 %v659, 0.0
    %v676 = vmax.f32 %v660, 0.0
    %v677 = vmax.f32 %v661, 0.0
    %v678 = vmax.f32 %v662, 0.0
    %v679 = vmax.f32 %v663, 0.0
    %v680 = vmax.f32 %v664, 0.0
    %v681 = vmax.f32 %v665, 0.0
    %v682 = vmax.f32 %v666, 0.0
    %v683 = vmax.f32 %v667, 0.0
    %v684 = vmax.f32 %v668, 0.0
    %v685 = vmax.f32 %v669, 0.0
    %v686 = vld [vmem:[%s8] sm:$0xff]
    %v687 = vld [vmem:[%s8 + $0x8] sm:$0xff]
    %v688 = vld [vmem:[%s8 + $0x10] sm:$0xff]
    %v689 = vld [vmem:[%s8 + $0x18] sm:$0xff]
    %v690 = vld [vmem:[%s8 + $0x20] sm:$0xff]
    %v691 = vld [vmem:[%s8 + $0x28] sm:$0xff]
    %v692 = vld [vmem:[%s8 + $0x30] sm:$0xff]
    %v693 = vld [vmem:[%s8 + $0x38] sm:$0xff]
    %v694 = vld [vmem:[%s8 + $0x40] sm:$0xff]
    %v695 = vld [vmem:[%s8 + $0x48] sm:$0xff]
    %v696 = vld [vmem:[%s8 + $0x50] sm:$0xff]
    %v697 = vld [vmem:[%s8 + $0x58] sm:$0xff]
    %v698 = vld [vmem:[%s8 + $0x60] sm:$0xff]
    %v699 = vld [vmem:[%s8 + $0x68] sm:$0xff]
    %v700 = vld [vmem:[%s8 + $0x70] sm:$0xff]
    %v701 = vld [vmem:[%s8 + $0x78] sm:$0xff]
    %v702 = vadd.f32 %v670, %v686
    %v703 = vadd.f32 %v671, %v687
    %v704 = vadd.f32 %v672, %v688
    %v705 = vadd.f32 %v673, %v689
    %v706 = vadd.f32 %v674, %v690
    %v707 = vadd.f32 %v675, %v691
    %v708 = vadd.f32 %v676, %v692
    %v709 = vadd.f32 %v677, %v693
    %v710 = vadd.f32 %v678, %v694
    %v711 = vadd.f32 %v679, %v695
    %v712 = vadd.f32 %v680, %v696
    %v713 = vadd.f32 %v681, %v697
    %v714 = vadd.f32 %v682, %v698
    %v715 = vadd.f32 %v683, %v699
    %v716 = vadd.f32 %v684, %v700
    %v717 = vadd.f32 %v685, %v701
    %v718 = vlaneseq
    %v719 = vand.u32 %v718, 127
    %vm720 = vcmp.lt.s32.totalorder %v719, 16
    %v721 = vsel %vm720, %v702, -1.0
    %v722 = vsel %vm720, %v703, -1.0
    %v723 = vsel %vm720, %v704, -1.0
    %v724 = vsel %vm720, %v705, -1.0
    %v725 = vsel %vm720, %v706, -1.0
    %v726 = vsel %vm720, %v707, -1.0
    %v727 = vsel %vm720, %v708, -1.0
    %v728 = vsel %vm720, %v709, -1.0
    %v729 = vsel %vm720, %v710, -1.0
    %v730 = vsel %vm720, %v711, -1.0
    %v731 = vsel %vm720, %v712, -1.0
    %v732 = vsel %vm720, %v713, -1.0
    %v733 = vsel %vm720, %v714, -1.0
    %v734 = vsel %vm720, %v715, -1.0
    %v735 = vsel %vm720, %v716, -1.0
    %v736 = vsel %vm720, %v717, -1.0
    %737 = vmax.xlane.f32.xlu0 %v721
    %v738 = vpop.xlane.xlu0 %737
    %739 = vmax.xlane.f32.xlu0 %v722
    %v740 = vpop.xlane.xlu0 %739
    %741 = vmax.xlane.f32.xlu0 %v723
    %v742 = vpop.xlane.xlu0 %741
    %743 = vmax.xlane.f32.xlu0 %v724
    %v744 = vpop.xlane.xlu0 %743
    %745 = vmax.xlane.f32.xlu0 %v725
    %v746 = vpop.xlane.xlu0 %745
    %747 = vmax.xlane.f32.xlu0 %v726
    %v748 = vpop.xlane.xlu0 %747
    %749 = vmax.xlane.f32.xlu0 %v727
    %v750 = vpop.xlane.xlu0 %749
    %751 = vmax.xlane.f32.xlu0 %v728
    %v752 = vpop.xlane.xlu0 %751
    %753 = vmax.xlane.f32.xlu0 %v729
    %v754 = vpop.xlane.xlu0 %753
    %755 = vmax.xlane.f32.xlu0 %v730
    %v756 = vpop.xlane.xlu0 %755
    %757 = vmax.xlane.f32.xlu0 %v731
    %v758 = vpop.xlane.xlu0 %757
    %759 = vmax.xlane.f32.xlu0 %v732
    %v760 = vpop.xlane.xlu0 %759
    %761 = vmax.xlane.f32.xlu0 %v733
    %v762 = vpop.xlane.xlu0 %761
    %763 = vmax.xlane.f32.xlu0 %v734
    %v764 = vpop.xlane.xlu0 %763
    %765 = vmax.xlane.f32.xlu0 %v735
    %v766 = vpop.xlane.xlu0 %765
    %767 = vmax.xlane.f32.xlu0 %v736
    %v768 = vpop.xlane.xlu0 %767
    %vm769 = vcmp.ge.f32.partialorder %v721, %v738
    %vm770 = vcmp.ge.f32.partialorder %v722, %v740
    %vm771 = vcmp.ge.f32.partialorder %v723, %v742
    %vm772 = vcmp.ge.f32.partialorder %v724, %v744
    %vm773 = vcmp.ge.f32.partialorder %v725, %v746
    %vm774 = vcmp.ge.f32.partialorder %v726, %v748
    %vm775 = vcmp.ge.f32.partialorder %v727, %v750
    %vm776 = vcmp.ge.f32.partialorder %v728, %v752
    %vm777 = vcmp.ge.f32.partialorder %v729, %v754
    %vm778 = vcmp.ge.f32.partialorder %v730, %v756
    %vm779 = vcmp.ge.f32.partialorder %v731, %v758
    %vm780 = vcmp.ge.f32.partialorder %v732, %v760
    %vm781 = vcmp.ge.f32.partialorder %v733, %v762
    %vm782 = vcmp.ge.f32.partialorder %v734, %v764
    %vm783 = vcmp.ge.f32.partialorder %v735, %v766
    %vm784 = vcmp.ge.f32.partialorder %v736, %v768
    %v785 = vsel %vm769, 1.0, 0.0
    %v786 = vsel %vm770, 1.0, 0.0
    %v787 = vsel %vm771, 1.0, 0.0
    %v788 = vsel %vm772, 1.0, 0.0
    %v789 = vsel %vm773, 1.0, 0.0
    %v790 = vsel %vm774, 1.0, 0.0
    %v791 = vsel %vm775, 1.0, 0.0
    %v792 = vsel %vm776, 1.0, 0.0
    %v793 = vsel %vm777, 1.0, 0.0
    %v794 = vsel %vm778, 1.0, 0.0
    %v795 = vsel %vm779, 1.0, 0.0
    %v796 = vsel %vm780, 1.0, 0.0
    %v797 = vsel %vm781, 1.0, 0.0
    %v798 = vsel %vm782, 1.0, 0.0
    %v799 = vsel %vm783, 1.0, 0.0
    %v800 = vsel %vm784, 1.0, 0.0
    %v801 = vsel %vm769, -inf, %v721
    %v802 = vsel %vm770, -inf, %v722
    %v803 = vsel %vm771, -inf, %v723
    %v804 = vsel %vm772, -inf, %v724
    %v805 = vsel %vm773, -inf, %v725
    %v806 = vsel %vm774, -inf, %v726
    %v807 = vsel %vm775, -inf, %v727
    %v808 = vsel %vm776, -inf, %v728
    %v809 = vsel %vm777, -inf, %v729
    %v810 = vsel %vm778, -inf, %v730
    %v811 = vsel %vm779, -inf, %v731
    %v812 = vsel %vm780, -inf, %v732
    %v813 = vsel %vm781, -inf, %v733
    %v814 = vsel %vm782, -inf, %v734
    %v815 = vsel %vm783, -inf, %v735
    %v816 = vsel %vm784, -inf, %v736
    %817 = vmax.xlane.f32.xlu0 %v801
    %v818 = vpop.xlane.xlu0 %817
    %819 = vmax.xlane.f32.xlu0 %v802
    %v820 = vpop.xlane.xlu0 %819
    %821 = vmax.xlane.f32.xlu0 %v803
    %v822 = vpop.xlane.xlu0 %821
    %823 = vmax.xlane.f32.xlu0 %v804
    %v824 = vpop.xlane.xlu0 %823
    %825 = vmax.xlane.f32.xlu0 %v805
    %v826 = vpop.xlane.xlu0 %825
    %827 = vmax.xlane.f32.xlu0 %v806
    %v828 = vpop.xlane.xlu0 %827
    %829 = vmax.xlane.f32.xlu0 %v807
    %v830 = vpop.xlane.xlu0 %829
    %831 = vmax.xlane.f32.xlu0 %v808
    %v832 = vpop.xlane.xlu0 %831
    %833 = vmax.xlane.f32.xlu0 %v809
    %v834 = vpop.xlane.xlu0 %833
    %835 = vmax.xlane.f32.xlu0 %v810
    %v836 = vpop.xlane.xlu0 %835
    %837 = vmax.xlane.f32.xlu0 %v811
    %v838 = vpop.xlane.xlu0 %837
    %839 = vmax.xlane.f32.xlu0 %v812
    %v840 = vpop.xlane.xlu0 %839
    %841 = vmax.xlane.f32.xlu0 %v813
    %v842 = vpop.xlane.xlu0 %841
    %843 = vmax.xlane.f32.xlu0 %v814
    %v844 = vpop.xlane.xlu0 %843
    %845 = vmax.xlane.f32.xlu0 %v815
    %v846 = vpop.xlane.xlu0 %845
    %847 = vmax.xlane.f32.xlu0 %v816
    %v848 = vpop.xlane.xlu0 %847
    %vm849 = vcmp.ge.f32.partialorder %v801, %v818
    %vm850 = vcmp.ge.f32.partialorder %v802, %v820
    %vm851 = vcmp.ge.f32.partialorder %v803, %v822
    %vm852 = vcmp.ge.f32.partialorder %v804, %v824
    %vm853 = vcmp.ge.f32.partialorder %v805, %v826
    %vm854 = vcmp.ge.f32.partialorder %v806, %v828
    %vm855 = vcmp.ge.f32.partialorder %v807, %v830
    %vm856 = vcmp.ge.f32.partialorder %v808, %v832
    %vm857 = vcmp.ge.f32.partialorder %v809, %v834
    %vm858 = vcmp.ge.f32.partialorder %v810, %v836
    %vm859 = vcmp.ge.f32.partialorder %v811, %v838
    %vm860 = vcmp.ge.f32.partialorder %v812, %v840
    %vm861 = vcmp.ge.f32.partialorder %v813, %v842
    %vm862 = vcmp.ge.f32.partialorder %v814, %v844
    %vm863 = vcmp.ge.f32.partialorder %v815, %v846
    %vm864 = vcmp.ge.f32.partialorder %v816, %v848
    %v865 = vsel %vm849, 1.0, %v785
    %v866 = vsel %vm850, 1.0, %v786
    %v867 = vsel %vm851, 1.0, %v787
    %v868 = vsel %vm852, 1.0, %v788
    %v869 = vsel %vm853, 1.0, %v789
    %v870 = vsel %vm854, 1.0, %v790
    %v871 = vsel %vm855, 1.0, %v791
    %v872 = vsel %vm856, 1.0, %v792
    %v873 = vsel %vm857, 1.0, %v793
    %v874 = vsel %vm858, 1.0, %v794
    %v875 = vsel %vm859, 1.0, %v795
    %v876 = vsel %vm860, 1.0, %v796
    %v877 = vsel %vm861, 1.0, %v797
    %v878 = vsel %vm862, 1.0, %v798
    %v879 = vsel %vm863, 1.0, %v799
    %v880 = vsel %vm864, 1.0, %v800
    %v881 = vsel %vm849, -inf, %v801
    %v882 = vsel %vm850, -inf, %v802
    %v883 = vsel %vm851, -inf, %v803
    %v884 = vsel %vm852, -inf, %v804
    %v885 = vsel %vm853, -inf, %v805
    %v886 = vsel %vm854, -inf, %v806
    %v887 = vsel %vm855, -inf, %v807
    %v888 = vsel %vm856, -inf, %v808
    %v889 = vsel %vm857, -inf, %v809
    %v890 = vsel %vm858, -inf, %v810
    %v891 = vsel %vm859, -inf, %v811
    %v892 = vsel %vm860, -inf, %v812
    %v893 = vsel %vm861, -inf, %v813
    %v894 = vsel %vm862, -inf, %v814
    %v895 = vsel %vm863, -inf, %v815
    %v896 = vsel %vm864, -inf, %v816
    %897 = vmax.xlane.f32.xlu0 %v881
    %v898 = vpop.xlane.xlu0 %897
    %899 = vmax.xlane.f32.xlu0 %v882
    %v900 = vpop.xlane.xlu0 %899
    %901 = vmax.xlane.f32.xlu0 %v883
    %v902 = vpop.xlane.xlu0 %901
    %903 = vmax.xlane.f32.xlu0 %v884
    %v904 = vpop.xlane.xlu0 %903
    %905 = vmax.xlane.f32.xlu0 %v885
    %v906 = vpop.xlane.xlu0 %905
    %907 = vmax.xlane.f32.xlu0 %v886
    %v908 = vpop.xlane.xlu0 %907
    %909 = vmax.xlane.f32.xlu0 %v887
    %v910 = vpop.xlane.xlu0 %909
    %911 = vmax.xlane.f32.xlu0 %v888
    %v912 = vpop.xlane.xlu0 %911
    %913 = vmax.xlane.f32.xlu0 %v889
    %v914 = vpop.xlane.xlu0 %913
    %915 = vmax.xlane.f32.xlu0 %v890
    %v916 = vpop.xlane.xlu0 %915
    %917 = vmax.xlane.f32.xlu0 %v891
    %v918 = vpop.xlane.xlu0 %917
    %919 = vmax.xlane.f32.xlu0 %v892
    %v920 = vpop.xlane.xlu0 %919
    %921 = vmax.xlane.f32.xlu0 %v893
    %v922 = vpop.xlane.xlu0 %921
    %923 = vmax.xlane.f32.xlu0 %v894
    %v924 = vpop.xlane.xlu0 %923
    %925 = vmax.xlane.f32.xlu0 %v895
    %v926 = vpop.xlane.xlu0 %925
    %927 = vmax.xlane.f32.xlu0 %v896
    %v928 = vpop.xlane.xlu0 %927
    %vm929 = vcmp.ge.f32.partialorder %v881, %v898
    %vm930 = vcmp.ge.f32.partialorder %v882, %v900
    %vm931 = vcmp.ge.f32.partialorder %v883, %v902
    %vm932 = vcmp.ge.f32.partialorder %v884, %v904
    %vm933 = vcmp.ge.f32.partialorder %v885, %v906
    %vm934 = vcmp.ge.f32.partialorder %v886, %v908
    %vm935 = vcmp.ge.f32.partialorder %v887, %v910
    %vm936 = vcmp.ge.f32.partialorder %v888, %v912
    %vm937 = vcmp.ge.f32.partialorder %v889, %v914
    %vm938 = vcmp.ge.f32.partialorder %v890, %v916
    %vm939 = vcmp.ge.f32.partialorder %v891, %v918
    %vm940 = vcmp.ge.f32.partialorder %v892, %v920
    %vm941 = vcmp.ge.f32.partialorder %v893, %v922
    %vm942 = vcmp.ge.f32.partialorder %v894, %v924
    %vm943 = vcmp.ge.f32.partialorder %v895, %v926
    %vm944 = vcmp.ge.f32.partialorder %v896, %v928
    %v945 = vsel %vm929, 1.0, %v865
    %v946 = vsel %vm930, 1.0, %v866
    %v947 = vsel %vm931, 1.0, %v867
    %v948 = vsel %vm932, 1.0, %v868
    %v949 = vsel %vm933, 1.0, %v869
    %v950 = vsel %vm934, 1.0, %v870
    %v951 = vsel %vm935, 1.0, %v871
    %v952 = vsel %vm936, 1.0, %v872
    %v953 = vsel %vm937, 1.0, %v873
    %v954 = vsel %vm938, 1.0, %v874
    %v955 = vsel %vm939, 1.0, %v875
    %v956 = vsel %vm940, 1.0, %v876
    %v957 = vsel %vm941, 1.0, %v877
    %v958 = vsel %vm942, 1.0, %v878
    %v959 = vsel %vm943, 1.0, %v879
    %v960 = vsel %vm944, 1.0, %v880
    %v961 = vsel %vm929, -inf, %v881
    %v962 = vsel %vm930, -inf, %v882
    %v963 = vsel %vm931, -inf, %v883
    %v964 = vsel %vm932, -inf, %v884
    %v965 = vsel %vm933, -inf, %v885
    %v966 = vsel %vm934, -inf, %v886
    %v967 = vsel %vm935, -inf, %v887
    %v968 = vsel %vm936, -inf, %v888
    %v969 = vsel %vm937, -inf, %v889
    %v970 = vsel %vm938, -inf, %v890
    %v971 = vsel %vm939, -inf, %v891
    %v972 = vsel %vm940, -inf, %v892
    %v973 = vsel %vm941, -inf, %v893
    %v974 = vsel %vm942, -inf, %v894
    %v975 = vsel %vm943, -inf, %v895
    %v976 = vsel %vm944, -inf, %v896
    %977 = vmax.xlane.f32.xlu0 %v961
    %v978 = vpop.xlane.xlu0 %977
    %979 = vmax.xlane.f32.xlu0 %v962
    %v980 = vpop.xlane.xlu0 %979
    %981 = vmax.xlane.f32.xlu0 %v963
    %v982 = vpop.xlane.xlu0 %981
    %983 = vmax.xlane.f32.xlu0 %v964
    %v984 = vpop.xlane.xlu0 %983
    %985 = vmax.xlane.f32.xlu0 %v965
    %v986 = vpop.xlane.xlu0 %985
    %987 = vmax.xlane.f32.xlu0 %v966
    %v988 = vpop.xlane.xlu0 %987
    %989 = vmax.xlane.f32.xlu0 %v967
    %v990 = vpop.xlane.xlu0 %989
    %991 = vmax.xlane.f32.xlu0 %v968
    %v992 = vpop.xlane.xlu0 %991
    %993 = vmax.xlane.f32.xlu0 %v969
    %v994 = vpop.xlane.xlu0 %993
    %995 = vmax.xlane.f32.xlu0 %v970
    %v996 = vpop.xlane.xlu0 %995
    %997 = vmax.xlane.f32.xlu0 %v971
    %v998 = vpop.xlane.xlu0 %997
    %999 = vmax.xlane.f32.xlu0 %v972
    %v1000 = vpop.xlane.xlu0 %999
    %1001 = vmax.xlane.f32.xlu0 %v973
    %v1002 = vpop.xlane.xlu0 %1001
    %1003 = vmax.xlane.f32.xlu0 %v974
    %v1004 = vpop.xlane.xlu0 %1003
    %1005 = vmax.xlane.f32.xlu0 %v975
    %v1006 = vpop.xlane.xlu0 %1005
    %1007 = vmax.xlane.f32.xlu0 %v976
    %v1008 = vpop.xlane.xlu0 %1007
    %vm1009 = vcmp.ge.f32.partialorder %v961, %v978
    %vm1010 = vcmp.ge.f32.partialorder %v962, %v980
    %vm1011 = vcmp.ge.f32.partialorder %v963, %v982
    %vm1012 = vcmp.ge.f32.partialorder %v964, %v984
    %vm1013 = vcmp.ge.f32.partialorder %v965, %v986
    %vm1014 = vcmp.ge.f32.partialorder %v966, %v988
    %vm1015 = vcmp.ge.f32.partialorder %v967, %v990
    %vm1016 = vcmp.ge.f32.partialorder %v968, %v992
    %vm1017 = vcmp.ge.f32.partialorder %v969, %v994
    %vm1018 = vcmp.ge.f32.partialorder %v970, %v996
    %vm1019 = vcmp.ge.f32.partialorder %v971, %v998
    %vm1020 = vcmp.ge.f32.partialorder %v972, %v1000
    %vm1021 = vcmp.ge.f32.partialorder %v973, %v1002
    %vm1022 = vcmp.ge.f32.partialorder %v974, %v1004
    %vm1023 = vcmp.ge.f32.partialorder %v975, %v1006
    %vm1024 = vcmp.ge.f32.partialorder %v976, %v1008
    %v1025 = vsel %vm1009, 1.0, %v945
    %v1026 = vsel %vm1010, 1.0, %v946
    %v1027 = vsel %vm1011, 1.0, %v947
    %v1028 = vsel %vm1012, 1.0, %v948
    %v1029 = vsel %vm1013, 1.0, %v949
    %v1030 = vsel %vm1014, 1.0, %v950
    %v1031 = vsel %vm1015, 1.0, %v951
    %v1032 = vsel %vm1016, 1.0, %v952
    %v1033 = vsel %vm1017, 1.0, %v953
    %v1034 = vsel %vm1018, 1.0, %v954
    %v1035 = vsel %vm1019, 1.0, %v955
    %v1036 = vsel %vm1020, 1.0, %v956
    %v1037 = vsel %vm1021, 1.0, %v957
    %v1038 = vsel %vm1022, 1.0, %v958
    %v1039 = vsel %vm1023, 1.0, %v959
    %v1040 = vsel %vm1024, 1.0, %v960
    %v1041 = vmul.f32 %v670, %v1025
    %v1042 = vmul.f32 %v671, %v1026
    %v1043 = vmul.f32 %v672, %v1027
    %v1044 = vmul.f32 %v673, %v1028
    %v1045 = vmul.f32 %v674, %v1029
    %v1046 = vmul.f32 %v675, %v1030
    %v1047 = vmul.f32 %v676, %v1031
    %v1048 = vmul.f32 %v677, %v1032
    %v1049 = vmul.f32 %v678, %v1033
    %v1050 = vmul.f32 %v679, %v1034
    %v1051 = vmul.f32 %v680, %v1035
    %v1052 = vmul.f32 %v681, %v1036
    %v1053 = vmul.f32 %v682, %v1037
    %v1054 = vmul.f32 %v683, %v1038
    %v1055 = vmul.f32 %v684, %v1039
    %v1056 = vmul.f32 %v685, %v1040
    %1057 = vst [vmem:[#allocation2] sm:$0xff] %v1041
    %1058 = vst [vmem:[#allocation2 + $0x8] sm:$0xff] %v1042
    %1059 = vst [vmem:[#allocation2 + $0x10] sm:$0xff] %v1043
    %1060 = vst [vmem:[#allocation2 + $0x18] sm:$0xff] %v1044
    %1061 = vst [vmem:[#allocation2 + $0x20] sm:$0xff] %v1045
    %1062 = vst [vmem:[#allocation2 + $0x28] sm:$0xff] %v1046
    %1063 = vst [vmem:[#allocation2 + $0x30] sm:$0xff] %v1047
    %1064 = vst [vmem:[#allocation2 + $0x38] sm:$0xff] %v1048
    %1065 = vst [vmem:[#allocation2 + $0x40] sm:$0xff] %v1049
    %1066 = vst [vmem:[#allocation2 + $0x48] sm:$0xff] %v1050
    %1067 = vst [vmem:[#allocation2 + $0x50] sm:$0xff] %v1051
    %1068 = vst [vmem:[#allocation2 + $0x58] sm:$0xff] %v1052
    %1069 = vst [vmem:[#allocation2 + $0x60] sm:$0xff] %v1053
    %1070 = vst [vmem:[#allocation2 + $0x68] sm:$0xff] %v1054
    %1071 = vst [vmem:[#allocation2 + $0x70] sm:$0xff] %v1055
    %1072 = vst [vmem:[#allocation2 + $0x78] sm:$0xff] %v1056
    // Predicated region
    $region38: #{tpu_custom_call.1} parent=1 // pred_check
      _
    $region39: #{tpu_custom_call.1} parent=1 // pred_check_branch
      %1074 = sbr.rel (0) target = $region41
    $region40: #{tpu_custom_call.1} parent=1 // pred_region
      %1076 = vsyncadd [#allocation3], 0
      %s1077 = sshll.u32 [#allocation2], 4
      %s1078 = int_to_ptr.vmem [resolvable:$true] %s1077
      %s1079 = sshll.u32 %s9, 4
      %s1080 = int_to_ptr.hbm [resolvable:$true] %s1079
      %1085 = dma.vmem_to_hbm [thread:$0]  %s1078, 2048, %s1080, [#allocation3], 128, 128, 8
    $region41: #{tpu_custom_call.1} parent=1 // pred_fallthru
      _
    // Predicated region
    $region42: #{tpu_custom_call.1} parent=1 // pred_check
      _
    $region43: #{tpu_custom_call.1} parent=1 // pred_check_branch
      %1087 = sbr.rel (0) target = $region45
    $region44: #{tpu_custom_call.1} parent=1 // pred_region
      %1089 = dma.done [#allocation3], 2048
    $region45: #{tpu_custom_call.1} parent=1 // pred_fallthru
      _
    %1090 = vsyncpa [#allocation3], 1

</llo_original>
